<compile_context>
chip_gen: v7x
topology: tpu7x:2x2x1
jax: 0.10.0
libtpu: 0.0.40
codegen_flags: <defaults>
</compile_context>

<pallas_src>
import functools

import jax
import jax.numpy as jnp
from jax.experimental import pallas as pl
from jax.experimental.pallas import tpu as pltpu


# ----------------------------------------------------------------------------
# Fused kernel: embedding gather (one-hot MXU) -> batched input projection ->
#               tanh recurrence -> output head -> log-softmax, all in VMEM.
# ----------------------------------------------------------------------------
def _fused_pipeline_kernel(tok_ref, emb_ref, wih_ref, whh_ref, brnn_ref,
                           wout_ref, bout_ref, o_ref, h_all_ref, *, T, B, V):
    # tok_ref:   (T*B, 1)  int32 time-major token ids
    # emb_ref:   (V, E)    embedding table
    # wih_ref:   (E, H)    pre-transposed input->hidden weights
    # whh_ref:   (H, H)    pre-transposed hidden->hidden weights
    # brnn_ref:  (1, H)    fused bias (b_ih + b_hh)
    # wout_ref:  (H, V)    pre-transposed output weights
    # bout_ref:  (1, V)
    # o_ref:     (T, B, V) log-probs, time-major (one contiguous lane-dense store)
    # h_all_ref: (T*B, H)  VMEM scratch holding all hidden states (time-major)

    # --- embedding gather as a one-hot matmul (exact; V=128 lane-dense) --------
    tok = tok_ref[...]                                              # (T*B, 1) int32
    col = jax.lax.broadcasted_iota(jnp.int32, (T * B, V), 1)        # (T*B, V)
    onehot = (tok == col).astype(jnp.float32)                       # (T*B, V)
    x = jnp.dot(onehot, emb_ref[...],
                preferred_element_type=jnp.float32)                 # (T*B, E)

    # --- input projection for ALL timesteps in one MXU pass --------------------
    pre = (jnp.dot(x, wih_ref[...], preferred_element_type=jnp.float32)
           + brnn_ref[...])                                         # (T*B, H)

    whh = whh_ref[...]                                              # (H, H), loaded once

    # --- serial tanh recurrence (fully unrolled; T small & static) -------------
    # h_0 = tanh(pre_0): initial hidden state is zero, so the W_hh term vanishes.
    h = jnp.tanh(pre[0:B, :])                                       # (B, H)
    h_all_ref[0:B, :] = h
    for t in range(1, T):
        h = jnp.tanh(pre[t * B:(t + 1) * B, :]
                     + jnp.dot(h, whh, preferred_element_type=jnp.float32))
        h_all_ref[t * B:(t + 1) * B, :] = h                         # aligned 8-sublane store

    # --- output head (one batched matmul) + row-wise log-softmax ---------------
    logits = (jnp.dot(h_all_ref[...], wout_ref[...],
                      preferred_element_type=jnp.float32)
              + bout_ref[...])                                      # (T*B, V)
    m = jnp.max(logits, axis=-1, keepdims=True)
    lse = m + jnp.log(jnp.sum(jnp.exp(logits - m), axis=-1, keepdims=True))
    lp = logits - lse                                               # (T*B, V)

    # --- one contiguous time-major store (pure reshape, tiles align (8,128)) ---
    o_ref[...] = lp.reshape(T, B, V)


# ----------------------------------------------------------------------------
# One-time parameter preparation (hoisted out of the per-call path).
# ----------------------------------------------------------------------------
def prepare_params(params):
    emb_table, w_ih, w_hh, b_ih, b_hh, w_out, b_out = params
    H = w_ih.shape[0]
    V = w_out.shape[0]
    return (emb_table.astype(jnp.float32),                # (V, E)
            w_ih.T.astype(jnp.float32),                   # (E, H)
            w_hh.T.astype(jnp.float32),                   # (H, H)
            (b_ih + b_hh).reshape(1, H).astype(jnp.float32),
            w_out.T.astype(jnp.float32),                  # (H, V)
            b_out.reshape(1, V).astype(jnp.float32))


# ----------------------------------------------------------------------------
# Jitted per-call wrapper: tiny int transpose + fused kernel + tiny transpose.
# ----------------------------------------------------------------------------
@jax.jit
def pipeline_model_forward(tokens, prepped):
    """tokens: (B, T) int32.  prepped: output of prepare_params.  Returns (B, T, V) log-probs."""
    emb_table, w_ih_t, w_hh_t, bias_rnn, w_out_t, b_out_r = prepped
    B, T = tokens.shape
    V, E = emb_table.shape
    H = w_ih_t.shape[1]

    # Time-major flattened token ids (tiny int transpose, fused under this jit).
    tok_tm = tokens.T.reshape(T * B, 1).astype(jnp.int32)

    kernel = functools.partial(_fused_pipeline_kernel, T=T, B=B, V=V)

    out_tm = pl.pallas_call(
        kernel,
        out_shape=jax.ShapeDtypeStruct((T, B, V), jnp.float32),
        grid_spec=pltpu.PrefetchScalarGridSpec(
            num_scalar_prefetch=0,
            grid=(1,),  # whole working set (~100 KB) fits VMEM on every generation
            in_specs=[
                pl.BlockSpec((T * B, 1), lambda i: (0, 0)),   # token ids
                pl.BlockSpec((V, E), lambda i: (0, 0)),       # embedding table
                pl.BlockSpec((E, H), lambda i: (0, 0)),       # W_ih^T
                pl.BlockSpec((H, H), lambda i: (0, 0)),       # W_hh^T
                pl.BlockSpec((1, H), lambda i: (0, 0)),       # fused RNN bias
                pl.BlockSpec((H, V), lambda i: (0, 0)),       # W_out^T
                pl.BlockSpec((1, V), lambda i: (0, 0)),       # b_out
            ],
            out_specs=pl.BlockSpec((T, B, V), lambda i: (0, 0, 0)),
            scratch_shapes=[pltpu.VMEM((T * B, H), jnp.float32)],
        ),
        compiler_params=pltpu.CompilerParams(
            dimension_semantics=("arbitrary",)),
    )(tok_tm, emb_table, w_ih_t, w_hh_t, bias_rnn, w_out_t, b_out_r)

    # Tiny (T,B,V)->(B,T,V) transpose to keep the original caller contract.
    return jnp.transpose(out_tm, (1, 0, 2))


# ----------------------------------------------------------------------------
# Pure-JAX reference (mirrors the PyTorch module's forward, eval mode)
# ----------------------------------------------------------------------------
def reference_forward(tokens, params):
    emb_table, w_ih, w_hh, b_ih, b_hh, w_out, b_out = params
    emb = emb_table[tokens]                                   # (B, T, E)
    B, T, _ = emb.shape
    H = w_ih.shape[0]
    h = jnp.zeros((B, H), jnp.float32)
    outs = []
    for t in range(T):
        h = jnp.tanh(emb[:, t] @ w_ih.T + b_ih + h @ w_hh.T + b_hh)
        outs.append(h)
    rnn_out = jnp.stack(outs, axis=1)                         # (B, T, H)
    logits = rnn_out @ w_out.T + b_out
    return jax.nn.log_softmax(logits, axis=-1)


if __name__ == "__main__":
    # Small shapes consistent with the module
    B, T = 8, 8          # batch, seq_len
    E = 16               # WORD_VECS.shape[1] (embedding dim)
    H = 32               # hidden_size
    V = 128              # vocab_size (len(TEXT.vocab))

    key = jax.random.PRNGKey(0)
    k_emb, k_wih, k_whh, k_bih, k_bhh, k_wo, k_bo, k_tok = jax.random.split(key, 8)

    scale = 1.0 / jnp.sqrt(H)
    emb_table = jax.random.normal(k_emb, (V, E), jnp.float32) * 0.1
    w_ih = jax.random.uniform(k_wih, (H, E), jnp.float32, -scale, scale)
    w_hh = jax.random.uniform(k_whh, (H, H), jnp.float32, -scale, scale)
    b_ih = jax.random.uniform(k_bih, (H,), jnp.float32, -scale, scale)
    b_hh = jax.random.uniform(k_bhh, (H,), jnp.float32, -scale, scale)
    w_out = jax.random.uniform(k_wo, (V, H), jnp.float32, -scale, scale)
    b_out = jax.random.uniform(k_bo, (V,), jnp.float32, -scale, scale)

    tokens = jax.random.randint(k_tok, (B, T), 0, V, dtype=jnp.int32)
    params = (emb_table, w_ih, w_hh, b_ih, b_hh, w_out, b_out)

    # One-time weight prep (hoisted out of the per-call path).
    prepped = prepare_params(params)

    out = pipeline_model_forward(tokens, prepped)
    out = jax.block_until_ready(out)

    ref = reference_forward(tokens, params)
    assert out.shape == (B, T, V)
    assert jnp.allclose(out, ref, atol=1e-4, rtol=1e-4), "mismatch vs reference"

    print("KERNEL_OK")
</pallas_src>

<mosaic_0001>
module attributes {stable_mosaic.version = 11 : i64} {
  func.func @_fused_pipeline_kernel(%arg0: i32, %arg1: memref<64x1xi32, #tpu.memory_space<vmem>>, %arg2: memref<128x16xf32, #tpu.memory_space<vmem>>, %arg3: memref<16x32xf32, #tpu.memory_space<vmem>>, %arg4: memref<32x32xf32, #tpu.memory_space<vmem>>, %arg5: memref<1x32xf32, #tpu.memory_space<vmem>>, %arg6: memref<32x128xf32, #tpu.memory_space<vmem>>, %arg7: memref<1x128xf32, #tpu.memory_space<vmem>>, %arg8: memref<8x8x128xf32, #tpu.memory_space<vmem>>, %arg9: memref<64x32xf32, #tpu.memory_space<vmem>>) attributes {dimension_semantics = [#tpu.dimension_semantics<arbitrary>], iteration_bounds = array<i64: 1>, scalar_prefetch = 0 : i64, scratch_operands = 1 : i64, tpu.core_type = #tpu.core_type<tc>, window_params = [{pipeline_mode = #tpu.pipeline_mode<synchronous>, transform_indices = @transform_0, window_bounds = array<i64: 64, 1>}, {pipeline_mode = #tpu.pipeline_mode<synchronous>, transform_indices = @transform_1, window_bounds = array<i64: 128, 16>}, {pipeline_mode = #tpu.pipeline_mode<synchronous>, transform_indices = @transform_2, window_bounds = array<i64: 16, 32>}, {pipeline_mode = #tpu.pipeline_mode<synchronous>, transform_indices = @transform_3, window_bounds = array<i64: 32, 32>}, {pipeline_mode = #tpu.pipeline_mode<synchronous>, transform_indices = @transform_4, window_bounds = array<i64: 1, 32>}, {pipeline_mode = #tpu.pipeline_mode<synchronous>, transform_indices = @transform_5, window_bounds = array<i64: 32, 128>}, {pipeline_mode = #tpu.pipeline_mode<synchronous>, transform_indices = @transform_6, window_bounds = array<i64: 1, 128>}, {pipeline_mode = #tpu.pipeline_mode<synchronous>, transform_indices = @transform_7, window_bounds = array<i64: 8, 8, 128>}]} {
    %c0 = arith.constant 0 : index
    %c0_0 = arith.constant 0 : index
    %0 = vector.load %arg1[%c0, %c0_0] : memref<64x1xi32, #tpu.memory_space<vmem>>, vector<64x1xi32>
    %1 = tpu.iota {dimensions = array<i32: 1>} : vector<64x128xi32>
    %2 = vector.broadcast %0 : vector<64x1xi32> to vector<64x128xi32>
    %3 = arith.cmpi eq, %2, %1 : vector<64x128xi32>
    %4 = arith.extui %3 : vector<64x128xi1> to vector<64x128xi32>
    %5 = arith.sitofp %4 : vector<64x128xi32> to vector<64x128xf32>
    %c0_1 = arith.constant 0 : index
    %c0_2 = arith.constant 0 : index
    %6 = vector.load %arg2[%c0_1, %c0_2] : memref<128x16xf32, #tpu.memory_space<vmem>>, vector<128x16xf32>
    %cst = arith.constant dense<0.000000e+00> : vector<64x16xf32>
    %7 = tpu.matmul %5, %6, %cst {dimension_numbers = #tpu.dot_dimension_numbers<[1], [0], [0], [1], [0, 0, 1, 1], [], []>} : vector<64x128xf32>, vector<128x16xf32>, vector<64x16xf32> -> vector<64x16xf32>
    %c0_3 = arith.constant 0 : index
    %c0_4 = arith.constant 0 : index
    %8 = vector.load %arg3[%c0_3, %c0_4] : memref<16x32xf32, #tpu.memory_space<vmem>>, vector<16x32xf32>
    %cst_5 = arith.constant dense<0.000000e+00> : vector<64x32xf32>
    %9 = tpu.matmul %7, %8, %cst_5 {dimension_numbers = #tpu.dot_dimension_numbers<[1], [0], [0], [1], [0, 0, 1, 1], [], []>} : vector<64x16xf32>, vector<16x32xf32>, vector<64x32xf32> -> vector<64x32xf32>
    %c0_6 = arith.constant 0 : index
    %c0_7 = arith.constant 0 : index
    %10 = vector.load %arg5[%c0_6, %c0_7] : memref<1x32xf32, #tpu.memory_space<vmem>>, vector<1x32xf32>
    %11 = vector.broadcast %10 : vector<1x32xf32> to vector<64x32xf32>
    %12 = arith.addf %9, %11 : vector<64x32xf32>
    %c0_8 = arith.constant 0 : index
    %c0_9 = arith.constant 0 : index
    %13 = vector.load %arg4[%c0_8, %c0_9] : memref<32x32xf32, #tpu.memory_space<vmem>>, vector<32x32xf32>
    %14 = vector.extract_strided_slice %12 {offsets = [0, 0], sizes = [8, 32], strides = [1, 1]} : vector<64x32xf32> to vector<8x32xf32>
    %15 = math.tanh %14 : vector<8x32xf32>
    %c0_10 = arith.constant 0 : index
    %c0_11 = arith.constant 0 : index
    %16 = vector.load %arg9[%c0_10, %c0_11] : memref<64x32xf32, #tpu.memory_space<vmem>>, vector<8x32xf32>
    tpu.vector_store %arg9[%c0_10, %c0_11], %15 {strides = array<i32>} : memref<64x32xf32, #tpu.memory_space<vmem>>, vector<8x32xf32>,
    %17 = vector.extract_strided_slice %12 {offsets = [8, 0], sizes = [8, 32], strides = [1, 1]} : vector<64x32xf32> to vector<8x32xf32>
    %cst_12 = arith.constant dense<0.000000e+00> : vector<8x32xf32>
    %18 = tpu.matmul %15, %13, %cst_12 {dimension_numbers = #tpu.dot_dimension_numbers<[1], [0], [0], [1], [0, 0, 1, 1], [], []>} : vector<8x32xf32>, vector<32x32xf32>, vector<8x32xf32> -> vector<8x32xf32>
    %19 = arith.addf %17, %18 : vector<8x32xf32>
    %20 = math.tanh %19 : vector<8x32xf32>
    %c8 = arith.constant 8 : index
    %c0_13 = arith.constant 0 : index
    %21 = vector.load %arg9[%c8, %c0_13] : memref<64x32xf32, #tpu.memory_space<vmem>>, vector<8x32xf32>
    tpu.vector_store %arg9[%c8, %c0_13], %20 {strides = array<i32>} : memref<64x32xf32, #tpu.memory_space<vmem>>, vector<8x32xf32>,
    %22 = vector.extract_strided_slice %12 {offsets = [16, 0], sizes = [8, 32], strides = [1, 1]} : vector<64x32xf32> to vector<8x32xf32>
    %cst_14 = arith.constant dense<0.000000e+00> : vector<8x32xf32>
    %23 = tpu.matmul %20, %13, %cst_14 {dimension_numbers = #tpu.dot_dimension_numbers<[1], [0], [0], [1], [0, 0, 1, 1], [], []>} : vector<8x32xf32>, vector<32x32xf32>, vector<8x32xf32> -> vector<8x32xf32>
    %24 = arith.addf %22, %23 : vector<8x32xf32>
    %25 = math.tanh %24 : vector<8x32xf32>
    %c16 = arith.constant 16 : index
    %c0_15 = arith.constant 0 : index
    %26 = vector.load %arg9[%c16, %c0_15] : memref<64x32xf32, #tpu.memory_space<vmem>>, vector<8x32xf32>
    tpu.vector_store %arg9[%c16, %c0_15], %25 {strides = array<i32>} : memref<64x32xf32, #tpu.memory_space<vmem>>, vector<8x32xf32>,
    %27 = vector.extract_strided_slice %12 {offsets = [24, 0], sizes = [8, 32], strides = [1, 1]} : vector<64x32xf32> to vector<8x32xf32>
    %cst_16 = arith.constant dense<0.000000e+00> : vector<8x32xf32>
    %28 = tpu.matmul %25, %13, %cst_16 {dimension_numbers = #tpu.dot_dimension_numbers<[1], [0], [0], [1], [0, 0, 1, 1], [], []>} : vector<8x32xf32>, vector<32x32xf32>, vector<8x32xf32> -> vector<8x32xf32>
    %29 = arith.addf %27, %28 : vector<8x32xf32>
    %30 = math.tanh %29 : vector<8x32xf32>
    %c24 = arith.constant 24 : index
    %c0_17 = arith.constant 0 : index
    %31 = vector.load %arg9[%c24, %c0_17] : memref<64x32xf32, #tpu.memory_space<vmem>>, vector<8x32xf32>
    tpu.vector_store %arg9[%c24, %c0_17], %30 {strides = array<i32>} : memref<64x32xf32, #tpu.memory_space<vmem>>, vector<8x32xf32>,
    %32 = vector.extract_strided_slice %12 {offsets = [32, 0], sizes = [8, 32], strides = [1, 1]} : vector<64x32xf32> to vector<8x32xf32>
    %cst_18 = arith.constant dense<0.000000e+00> : vector<8x32xf32>
    %33 = tpu.matmul %30, %13, %cst_18 {dimension_numbers = #tpu.dot_dimension_numbers<[1], [0], [0], [1], [0, 0, 1, 1], [], []>} : vector<8x32xf32>, vector<32x32xf32>, vector<8x32xf32> -> vector<8x32xf32>
    %34 = arith.addf %32, %33 : vector<8x32xf32>
    %35 = math.tanh %34 : vector<8x32xf32>
    %c32 = arith.constant 32 : index
    %c0_19 = arith.constant 0 : index
    %36 = vector.load %arg9[%c32, %c0_19] : memref<64x32xf32, #tpu.memory_space<vmem>>, vector<8x32xf32>
    tpu.vector_store %arg9[%c32, %c0_19], %35 {strides = array<i32>} : memref<64x32xf32, #tpu.memory_space<vmem>>, vector<8x32xf32>,
    %37 = vector.extract_strided_slice %12 {offsets = [40, 0], sizes = [8, 32], strides = [1, 1]} : vector<64x32xf32> to vector<8x32xf32>
    %cst_20 = arith.constant dense<0.000000e+00> : vector<8x32xf32>
    %38 = tpu.matmul %35, %13, %cst_20 {dimension_numbers = #tpu.dot_dimension_numbers<[1], [0], [0], [1], [0, 0, 1, 1], [], []>} : vector<8x32xf32>, vector<32x32xf32>, vector<8x32xf32> -> vector<8x32xf32>
    %39 = arith.addf %37, %38 : vector<8x32xf32>
    %40 = math.tanh %39 : vector<8x32xf32>
    %c40 = arith.constant 40 : index
    %c0_21 = arith.constant 0 : index
    %41 = vector.load %arg9[%c40, %c0_21] : memref<64x32xf32, #tpu.memory_space<vmem>>, vector<8x32xf32>
    tpu.vector_store %arg9[%c40, %c0_21], %40 {strides = array<i32>} : memref<64x32xf32, #tpu.memory_space<vmem>>, vector<8x32xf32>,
    %42 = vector.extract_strided_slice %12 {offsets = [48, 0], sizes = [8, 32], strides = [1, 1]} : vector<64x32xf32> to vector<8x32xf32>
    %cst_22 = arith.constant dense<0.000000e+00> : vector<8x32xf32>
    %43 = tpu.matmul %40, %13, %cst_22 {dimension_numbers = #tpu.dot_dimension_numbers<[1], [0], [0], [1], [0, 0, 1, 1], [], []>} : vector<8x32xf32>, vector<32x32xf32>, vector<8x32xf32> -> vector<8x32xf32>
    %44 = arith.addf %42, %43 : vector<8x32xf32>
    %45 = math.tanh %44 : vector<8x32xf32>
    %c48 = arith.constant 48 : index
    %c0_23 = arith.constant 0 : index
    %46 = vector.load %arg9[%c48, %c0_23] : memref<64x32xf32, #tpu.memory_space<vmem>>, vector<8x32xf32>
    tpu.vector_store %arg9[%c48, %c0_23], %45 {strides = array<i32>} : memref<64x32xf32, #tpu.memory_space<vmem>>, vector<8x32xf32>,
    %47 = vector.extract_strided_slice %12 {offsets = [56, 0], sizes = [8, 32], strides = [1, 1]} : vector<64x32xf32> to vector<8x32xf32>
    %cst_24 = arith.constant dense<0.000000e+00> : vector<8x32xf32>
    %48 = tpu.matmul %45, %13, %cst_24 {dimension_numbers = #tpu.dot_dimension_numbers<[1], [0], [0], [1], [0, 0, 1, 1], [], []>} : vector<8x32xf32>, vector<32x32xf32>, vector<8x32xf32> -> vector<8x32xf32>
    %49 = arith.addf %47, %48 : vector<8x32xf32>
    %50 = math.tanh %49 : vector<8x32xf32>
    %c56 = arith.constant 56 : index
    %c0_25 = arith.constant 0 : index
    %51 = vector.load %arg9[%c56, %c0_25] : memref<64x32xf32, #tpu.memory_space<vmem>>, vector<8x32xf32>
    tpu.vector_store %arg9[%c56, %c0_25], %50 {strides = array<i32>} : memref<64x32xf32, #tpu.memory_space<vmem>>, vector<8x32xf32>,
    %c0_26 = arith.constant 0 : index
    %c0_27 = arith.constant 0 : index
    %52 = vector.load %arg9[%c0_26, %c0_27] : memref<64x32xf32, #tpu.memory_space<vmem>>, vector<64x32xf32>
    %c0_28 = arith.constant 0 : index
    %c0_29 = arith.constant 0 : index
    %53 = vector.load %arg6[%c0_28, %c0_29] : memref<32x128xf32, #tpu.memory_space<vmem>>, vector<32x128xf32>
    %cst_30 = arith.constant dense<0.000000e+00> : vector<64x128xf32>
    %54 = tpu.matmul %52, %53, %cst_30 {dimension_numbers = #tpu.dot_dimension_numbers<[1], [0], [0], [1], [0, 0, 1, 1], [], []>} : vector<64x32xf32>, vector<32x128xf32>, vector<64x128xf32> -> vector<64x128xf32>
    %c0_31 = arith.constant 0 : index
    %c0_32 = arith.constant 0 : index
    %55 = vector.load %arg7[%c0_31, %c0_32] : memref<1x128xf32, #tpu.memory_space<vmem>>, vector<1x128xf32>
    %56 = vector.broadcast %55 : vector<1x128xf32> to vector<64x128xf32>
    %57 = arith.addf %54, %56 : vector<64x128xf32>
    %cst_33 = arith.constant dense<0xFF800000> : vector<64xf32>
    %58 = vector.multi_reduction <maximumf>, %57, %cst_33 [1] : vector<64x128xf32> to vector<64xf32>
    %59 = vector.shape_cast %58 : vector<64xf32> to vector<64x1xf32>
    %60 = vector.broadcast %59 : vector<64x1xf32> to vector<64x128xf32>
    %61 = arith.subf %57, %60 : vector<64x128xf32>
    %62 = math.exp %61 : vector<64x128xf32>
    %cst_34 = arith.constant dense<0.000000e+00> : vector<64xf32>
    %63 = vector.multi_reduction <add>, %62, %cst_34 [1] : vector<64x128xf32> to vector<64xf32>
    %64 = vector.shape_cast %63 : vector<64xf32> to vector<64x1xf32>
    %65 = math.log %64 : vector<64x1xf32>
    %66 = arith.addf %59, %65 : vector<64x1xf32>
    %67 = vector.broadcast %66 : vector<64x1xf32> to vector<64x128xf32>
    %68 = arith.subf %57, %67 : vector<64x128xf32>
    %69 = vector.shape_cast %68 : vector<64x128xf32> to vector<8x8x128xf32>
    %c0_35 = arith.constant 0 : index
    %c0_36 = arith.constant 0 : index
    %c0_37 = arith.constant 0 : index
    %70 = vector.load %arg8[%c0_35, %c0_36, %c0_37] : memref<8x8x128xf32, #tpu.memory_space<vmem>>, vector<8x8x128xf32>
    tpu.vector_store %arg8[%c0_35, %c0_36, %c0_37], %69 {strides = array<i32>} : memref<8x8x128xf32, #tpu.memory_space<vmem>>, vector<8x8x128xf32>,
    return
  }
  func.func @transform_0(%arg0: i32) -> (i32, i32) {
    %c0_i32 = arith.constant 0 : i32
    %c0_i32_0 = arith.constant 0 : i32
    %c0_i32_1 = arith.constant 0 : i32
    return %c0_i32, %c0_i32_0 : i32, i32
  }
  func.func @transform_1(%arg0: i32) -> (i32, i32) {
    %c0_i32 = arith.constant 0 : i32
    %c0_i32_0 = arith.constant 0 : i32
    %c0_i32_1 = arith.constant 0 : i32
    return %c0_i32, %c0_i32_0 : i32, i32
  }
  func.func @transform_2(%arg0: i32) -> (i32, i32) {
    %c0_i32 = arith.constant 0 : i32
    %c0_i32_0 = arith.constant 0 : i32
    %c0_i32_1 = arith.constant 0 : i32
    return %c0_i32, %c0_i32_0 : i32, i32
  }
  func.func @transform_3(%arg0: i32) -> (i32, i32) {
    %c0_i32 = arith.constant 0 : i32
    %c0_i32_0 = arith.constant 0 : i32
    %c0_i32_1 = arith.constant 0 : i32
    return %c0_i32, %c0_i32_0 : i32, i32
  }
  func.func @transform_4(%arg0: i32) -> (i32, i32) {
    %c0_i32 = arith.constant 0 : i32
    %c0_i32_0 = arith.constant 0 : i32
    %c0_i32_1 = arith.constant 0 : i32
    return %c0_i32, %c0_i32_0 : i32, i32
  }
  func.func @transform_5(%arg0: i32) -> (i32, i32) {
    %c0_i32 = arith.constant 0 : i32
    %c0_i32_0 = arith.constant 0 : i32
    %c0_i32_1 = arith.constant 0 : i32
    return %c0_i32, %c0_i32_0 : i32, i32
  }
  func.func @transform_6(%arg0: i32) -> (i32, i32) {
    %c0_i32 = arith.constant 0 : i32
    %c0_i32_0 = arith.constant 0 : i32
    %c0_i32_1 = arith.constant 0 : i32
    return %c0_i32, %c0_i32_0 : i32, i32
  }
  func.func @transform_7(%arg0: i32) -> (i32, i32, i32) {
    %c0_i32 = arith.constant 0 : i32
    %c0_i32_0 = arith.constant 0 : i32
    %c0_i32_1 = arith.constant 0 : i32
    %c0_i32_2 = arith.constant 0 : i32
    return %c0_i32, %c0_i32_0, %c0_i32_1 : i32, i32, i32
  }
}

</mosaic_0001>

<llo_original>
// kernel: pipeline_model_forward.1
$region0: #{pipeline_model_forward.1}
  #allocation0 [shape = 'u32[]', space=smem, size = 0x4, offset = 0x4, fixed_abs, tag = 'smem constant byte address 0x4 - core index']
  #allocation1 [shape = 'u32[144,128]{1,0:T(1,128)}', space=vmem, size = 0x12000, scoped, tag = 'internal scratch']
  #allocation2 [shape = 'f32[64,32]{1,0:T(8,128)}', space=vmem, size = 0x8000, scoped, tag = 'scratch operand']
  %s0 = inlined_call_operand.vmem [shape: s32[64,1], index: 0, kind: input, shape index: {}]
  %s1 = inlined_call_operand.vmem [shape: f32[128,16], index: 1, kind: input, shape index: {}]
  %s2 = inlined_call_operand.vmem [shape: f32[16,32], index: 2, kind: input, shape index: {}]
  %s3 = inlined_call_operand.vmem [shape: f32[32,32], index: 3, kind: input, shape index: {}]
  %s4 = inlined_call_operand.vmem [shape: f32[1,32], index: 4, kind: input, shape index: {}]
  %s5 = inlined_call_operand.vmem [shape: f32[32,128], index: 5, kind: input, shape index: {}]
  %s6 = inlined_call_operand.vmem [shape: f32[1,128], index: 6, kind: input, shape index: {}]
  %s7 = inlined_call_operand.vmem [shape: f32[8,8,128], index: 7, kind: output, shape index: {}]
  %s8 = sld [smem:[#allocation0]]
  $region38: #{pipeline_model_forward.1} parent=0
    _
  %s10 = ssub.s32 1, %s8
  %s11 = scalar_select 0, %s10, %s8
  // Predicated region
  $region2: #{pipeline_model_forward.1} parent=0 // pred_check
    _
  $region3: #{pipeline_model_forward.1} parent=0 // pred_check_branch
    %13 = sbr.rel (0) target = $region5
  $region4: #{pipeline_model_forward.1} parent=0 // pred_region
    _
  $region5: #{pipeline_model_forward.1} parent=0 // pred_fallthru
    _
  // Predicated region
  $region6: #{pipeline_model_forward.1} parent=0 // pred_check
    _
  $region7: #{pipeline_model_forward.1} parent=0 // pred_check_branch
    %15 = sbr.rel (0) target = $region9
  $region8: #{pipeline_model_forward.1} parent=0 // pred_region
    _
  $region9: #{pipeline_model_forward.1} parent=0 // pred_fallthru
    _
  // Predicated region
  $region10: #{pipeline_model_forward.1} parent=0 // pred_check
    _
  $region11: #{pipeline_model_forward.1} parent=0 // pred_check_branch
    %17 = sbr.rel (0) target = $region13
  $region12: #{pipeline_model_forward.1} parent=0 // pred_region
    _
  $region13: #{pipeline_model_forward.1} parent=0 // pred_fallthru
    _
  // Predicated region
  $region14: #{pipeline_model_forward.1} parent=0 // pred_check
    _
  $region15: #{pipeline_model_forward.1} parent=0 // pred_check_branch
    %19 = sbr.rel (0) target = $region17
  $region16: #{pipeline_model_forward.1} parent=0 // pred_region
    _
  $region17: #{pipeline_model_forward.1} parent=0 // pred_fallthru
    _
  // Predicated region
  $region18: #{pipeline_model_forward.1} parent=0 // pred_check
    _
  $region19: #{pipeline_model_forward.1} parent=0 // pred_check_branch
    %21 = sbr.rel (0) target = $region21
  $region20: #{pipeline_model_forward.1} parent=0 // pred_region
    _
  $region21: #{pipeline_model_forward.1} parent=0 // pred_fallthru
    _
  // Predicated region
  $region22: #{pipeline_model_forward.1} parent=0 // pred_check
    _
  $region23: #{pipeline_model_forward.1} parent=0 // pred_check_branch
    %23 = sbr.rel (0) target = $region25
  $region24: #{pipeline_model_forward.1} parent=0 // pred_region
    _
  $region25: #{pipeline_model_forward.1} parent=0 // pred_fallthru
    _
  // Predicated region
  $region26: #{pipeline_model_forward.1} parent=0 // pred_check
    _
  $region27: #{pipeline_model_forward.1} parent=0 // pred_check_branch
    %25 = sbr.rel (0) target = $region29
  $region28: #{pipeline_model_forward.1} parent=0 // pred_region
    _
  $region29: #{pipeline_model_forward.1} parent=0 // pred_fallthru
    _
  %v26 = vld [vmem:[%s0] sm:$0xff]
  %v27 = vld [vmem:[%s0 + $0x8] sm:$0xff]
  %v28 = vld [vmem:[%s0 + $0x10] sm:$0xff]
  %v29 = vld [vmem:[%s0 + $0x18] sm:$0xff]
  %v30 = vld [vmem:[%s0 + $0x20] sm:$0xff]
  %v31 = vld [vmem:[%s0 + $0x28] sm:$0xff]
  %v32 = vld [vmem:[%s0 + $0x30] sm:$0xff]
  %v33 = vld [vmem:[%s0 + $0x38] sm:$0xff]
  %v34 = vlaneseq
  %v35 = vand.u32 %v34, 127
  %36 = vset.pattern.permute.xlu0 0
  %37 = vperm.xlu0 %36, %v26
  %v38 = vpop.permute.xlu0 %37
  %39 = vset.pattern.permute.xlu0 0
  %40 = vperm.xlu0 %39, %v27
  %v41 = vpop.permute.xlu0 %40
  %42 = vset.pattern.permute.xlu0 0
  %43 = vperm.xlu0 %42, %v28
  %v44 = vpop.permute.xlu0 %43
  %45 = vset.pattern.permute.xlu0 0
  %46 = vperm.xlu0 %45, %v29
  %v47 = vpop.permute.xlu0 %46
  %48 = vset.pattern.permute.xlu0 0
  %49 = vperm.xlu0 %48, %v30
  %v50 = vpop.permute.xlu0 %49
  %51 = vset.pattern.permute.xlu0 0
  %52 = vperm.xlu0 %51, %v31
  %v53 = vpop.permute.xlu0 %52
  %54 = vset.pattern.permute.xlu0 0
  %55 = vperm.xlu0 %54, %v32
  %v56 = vpop.permute.xlu0 %55
  %57 = vset.pattern.permute.xlu0 0
  %58 = vperm.xlu0 %57, %v33
  %v59 = vpop.permute.xlu0 %58
  %vm60 = vcmp.eq.s32.totalorder %v38, %v35
  %vm61 = vcmp.eq.s32.totalorder %v41, %v35
  %vm62 = vcmp.eq.s32.totalorder %v44, %v35
  %vm63 = vcmp.eq.s32.totalorder %v47, %v35
  %vm64 = vcmp.eq.s32.totalorder %v50, %v35
  %vm65 = vcmp.eq.s32.totalorder %v53, %v35
  %vm66 = vcmp.eq.s32.totalorder %v56, %v35
  %vm67 = vcmp.eq.s32.totalorder %v59, %v35
  %v68 = vsel %vm60, 1, 0
  %v69 = vsel %vm61, 1, 0
  %v70 = vsel %vm62, 1, 0
  %v71 = vsel %vm63, 1, 0
  %v72 = vsel %vm64, 1, 0
  %v73 = vsel %vm65, 1, 0
  %v74 = vsel %vm66, 1, 0
  %v75 = vsel %vm67, 1, 0
  %v76 = vcvt.s32.f32 %v68
  %v77 = vcvt.s32.f32 %v69
  %v78 = vcvt.s32.f32 %v70
  %v79 = vcvt.s32.f32 %v71
  %v80 = vcvt.s32.f32 %v72
  %v81 = vcvt.s32.f32 %v73
  %v82 = vcvt.s32.f32 %v74
  %v83 = vcvt.s32.f32 %v75
  %v84 = vld [vmem:[%s1] sm:$0xff]
  %v85 = vld [vmem:[%s1 + $0x8] sm:$0xff]
  %v86 = vld [vmem:[%s1 + $0x10] sm:$0xff]
  %v87 = vld [vmem:[%s1 + $0x18] sm:$0xff]
  %v88 = vld [vmem:[%s1 + $0x20] sm:$0xff]
  %v89 = vld [vmem:[%s1 + $0x28] sm:$0xff]
  %v90 = vld [vmem:[%s1 + $0x30] sm:$0xff]
  %v91 = vld [vmem:[%s1 + $0x38] sm:$0xff]
  %v92 = vld [vmem:[%s1 + $0x40] sm:$0xff]
  %v93 = vld [vmem:[%s1 + $0x48] sm:$0xff]
  %v94 = vld [vmem:[%s1 + $0x50] sm:$0xff]
  %v95 = vld [vmem:[%s1 + $0x58] sm:$0xff]
  %v96 = vld [vmem:[%s1 + $0x60] sm:$0xff]
  %v97 = vld [vmem:[%s1 + $0x68] sm:$0xff]
  %v98 = vld [vmem:[%s1 + $0x70] sm:$0xff]
  %v99 = vld [vmem:[%s1 + $0x78] sm:$0xff]
  %100 = vmatprep.subr.mxu0 0.0
  %101 = vmatpush1.msra.mxu0 %v84
  %102 = vmatprep.subr.mxu0 0.0
  %103 = vmatpush1.msra.mxu0 %v85
  %104 = vmatprep.subr.mxu0 0.0
  %105 = vmatpush1.msra.mxu0 %v86
  %106 = vmatprep.subr.mxu0 0.0
  %107 = vmatpush1.msra.mxu0 %v87
  %108 = vmatprep.subr.mxu0 0.0
  %109 = vmatpush1.msra.mxu0 %v88
  %110 = vmatprep.subr.mxu0 0.0
  %111 = vmatpush1.msra.mxu0 %v89
  %112 = vmatprep.subr.mxu0 0.0
  %113 = vmatpush1.msra.mxu0 %v90
  %114 = vmatprep.subr.mxu0 0.0
  %115 = vmatpush1.msra.mxu0 %v91
  %116 = vmatprep.subr.mxu0 0.0
  %117 = vmatpush1.msra.mxu0 %v92
  %118 = vmatprep.subr.mxu0 0.0
  %119 = vmatpush1.msra.mxu0 %v93
  %120 = vmatprep.subr.mxu0 0.0
  %121 = vmatpush1.msra.mxu0 %v94
  %122 = vmatprep.subr.mxu0 0.0
  %123 = vmatpush1.msra.mxu0 %v95
  %124 = vmatprep.subr.mxu0 0.0
  %125 = vmatpush1.msra.mxu0 %v96
  %126 = vmatprep.subr.mxu0 0.0
  %127 = vmatpush1.msra.mxu0 %v97
  %128 = vmatprep.subr.mxu0 0.0
  %129 = vmatpush1.msra.mxu0 %v98
  %130 = vmatprep.subr.mxu0 0.0
  %131 = vmatpush1.msra.mxu0 %v99
  %132 = vmatprep.subr.mxu0 0.0
  %133 = vmatpush1.msra.mxu0 0.0
  %134 = vmatprep.subr.mxu0 0.0
  %135 = vmatpush1.msra.mxu0 0.0
  %136 = vmatprep.subr.mxu0 0.0
  %137 = vmatpush1.msra.mxu0 0.0
  %138 = vmatprep.subr.mxu0 0.0
  %139 = vmatpush1.msra.mxu0 0.0
  %140 = vmatprep.subr.mxu0 0.0
  %141 = vmatpush1.msra.mxu0 0.0
  %142 = vmatprep.subr.mxu0 0.0
  %143 = vmatpush1.msra.mxu0 0.0
  %144 = vmatprep.subr.mxu0 0.0
  %145 = vmatpush1.msra.mxu0 0.0
  %146 = vmatprep.subr.mxu0 0.0
  %147 = vmatpush1.msra.mxu0 0.0
  %148 = vmatprep.subr.mxu0 0.0
  %149 = vmatpush1.msra.mxu0 0.0
  %150 = vmatprep.subr.mxu0 0.0
  %151 = vmatpush1.msra.mxu0 0.0
  %152 = vmatprep.subr.mxu0 0.0
  %153 = vmatpush1.msra.mxu0 0.0
  %154 = vmatprep.subr.mxu0 0.0
  %155 = vmatpush1.msra.mxu0 0.0
  %156 = vmatprep.subr.mxu0 0.0
  %157 = vmatpush1.msra.mxu0 0.0
  %158 = vmatprep.subr.mxu0 0.0
  %159 = vmatpush1.msra.mxu0 0.0
  %160 = vmatprep.subr.mxu0 0.0
  %161 = vmatpush1.msra.mxu0 0.0
  %162 = vmatprep.subr.mxu0 0.0
  %163 = vmatpush1.msra.mxu0 0.0
  %164 = vmatprep.mubr.f32.mxu0 0.0
  %165 = vmatmul.mubr.f32.gmra.mrb[0].mxu0 %v76
  %v166 = vpop.f32.mrb[0].mxu0
  %v167 = vadd.f32 0.0, %v166
  %v168 = vpop.f32.mrb[0].mxu0
  %169 = vmatprep.mubr.f32.mxu0 0.0
  %170 = vmatmul.mubr.f32.gmra.mrb[0].mxu0 %v77
  %v171 = vpop.f32.mrb[0].mxu0
  %v172 = vadd.f32 0.0, %v171
  %v173 = vpop.f32.mrb[0].mxu0
  %174 = vmatprep.mubr.f32.mxu0 0.0
  %175 = vmatmul.mubr.f32.gmra.mrb[0].mxu0 %v78
  %v176 = vpop.f32.mrb[0].mxu0
  %v177 = vadd.f32 0.0, %v176
  %v178 = vpop.f32.mrb[0].mxu0
  %179 = vmatprep.mubr.f32.mxu0 0.0
  %180 = vmatmul.mubr.f32.gmra.mrb[0].mxu0 %v79
  %v181 = vpop.f32.mrb[0].mxu0
  %v182 = vadd.f32 0.0, %v181
  %v183 = vpop.f32.mrb[0].mxu0
  %184 = vmatprep.mubr.f32.mxu0 0.0
  %185 = vmatmul.mubr.f32.gmra.mrb[0].mxu0 %v80
  %v186 = vpop.f32.mrb[0].mxu0
  %v187 = vadd.f32 0.0, %v186
  %v188 = vpop.f32.mrb[0].mxu0
  %189 = vmatprep.mubr.f32.mxu0 0.0
  %190 = vmatmul.mubr.f32.gmra.mrb[0].mxu0 %v81
  %v191 = vpop.f32.mrb[0].mxu0
  %v192 = vadd.f32 0.0, %v191
  %v193 = vpop.f32.mrb[0].mxu0
  %194 = vmatprep.mubr.f32.mxu0 0.0
  %195 = vmatmul.mubr.f32.gmra.mrb[0].mxu0 %v82
  %v196 = vpop.f32.mrb[0].mxu0
  %v197 = vadd.f32 0.0, %v196
  %v198 = vpop.f32.mrb[0].mxu0
  %199 = vmatprep.mubr.f32.mxu0 0.0
  %200 = vmatmul.mubr.f32.gmra.mrb[0].mxu0 %v83
  %v201 = vpop.f32.mrb[0].mxu0
  %v202 = vadd.f32 0.0, %v201
  %v203 = vpop.f32.mrb[0].mxu0
  %204 = vdwg.mxu0
  %v205 = vld [vmem:[%s2] sm:$0xff]
  %v206 = vld [vmem:[%s2 + $0x8] sm:$0xff]
  %v207 = vld [vmem:[%s4] sm:$0x1]
  %v209 = vlaneseq
  %v210 = vshrl.u32 %v209, 7
  %v211 = vsub.s32 0, %v210
  %v212 = vrot.slane %v207, %v211
  %vm214 = vcmask 130048
  %v216 = vsel %vm214, %v167, 0
  %v219 = vsel %vm214, %v172, 0
  %v222 = vsel %vm214, %v177, 0
  %v225 = vsel %vm214, %v182, 0
  %v228 = vsel %vm214, %v187, 0
  %v231 = vsel %vm214, %v192, 0
  %v234 = vsel %vm214, %v197, 0
  %v237 = vsel %vm214, %v202, 0
  %239 = vmatprep.subr.mxu0 0.0
  %240 = vmatpush1.msra.mxu0 %v205
  %241 = vmatprep.subr.mxu0 0.0
  %242 = vmatpush1.msra.mxu0 %v206
  %243 = vmatprep.subr.mxu0 0.0
  %244 = vmatpush1.msra.mxu0 0.0
  %245 = vmatprep.subr.mxu0 0.0
  %246 = vmatpush1.msra.mxu0 0.0
  %247 = vmatprep.subr.mxu0 0.0
  %248 = vmatpush1.msra.mxu0 0.0
  %249 = vmatprep.subr.mxu0 0.0
  %250 = vmatpush1.msra.mxu0 0.0
  %251 = vmatprep.subr.mxu0 0.0
  %252 = vmatpush1.msra.mxu0 0.0
  %253 = vmatprep.subr.mxu0 0.0
  %254 = vmatpush1.msra.mxu0 0.0
  %255 = vmatprep.subr.mxu0 0.0
  %256 = vmatpush1.msra.mxu0 0.0
  %257 = vmatprep.subr.mxu0 0.0
  %258 = vmatpush1.msra.mxu0 0.0
  %259 = vmatprep.subr.mxu0 0.0
  %260 = vmatpush1.msra.mxu0 0.0
  %261 = vmatprep.subr.mxu0 0.0
  %262 = vmatpush1.msra.mxu0 0.0
  %263 = vmatprep.subr.mxu0 0.0
  %264 = vmatpush1.msra.mxu0 0.0
  %265 = vmatprep.subr.mxu0 0.0
  %266 = vmatpush1.msra.mxu0 0.0
  %267 = vmatprep.subr.mxu0 0.0
  %268 = vmatpush1.msra.mxu0 0.0
  %269 = vmatprep.subr.mxu0 0.0
  %270 = vmatpush1.msra.mxu0 0.0
  %271 = vmatprep.subr.mxu0 0.0
  %272 = vmatpush1.msra.mxu0 0.0
  %273 = vmatprep.subr.mxu0 0.0
  %274 = vmatpush1.msra.mxu0 0.0
  %275 = vmatprep.subr.mxu0 0.0
  %276 = vmatpush1.msra.mxu0 0.0
  %277 = vmatprep.subr.mxu0 0.0
  %278 = vmatpush1.msra.mxu0 0.0
  %279 = vmatprep.subr.mxu0 0.0
  %280 = vmatpush1.msra.mxu0 0.0
  %281 = vmatprep.subr.mxu0 0.0
  %282 = vmatpush1.msra.mxu0 0.0
  %283 = vmatprep.subr.mxu0 0.0
  %284 = vmatpush1.msra.mxu0 0.0
  %285 = vmatprep.subr.mxu0 0.0
  %286 = vmatpush1.msra.mxu0 0.0
  %287 = vmatprep.subr.mxu0 0.0
  %288 = vmatpush1.msra.mxu0 0.0
  %289 = vmatprep.subr.mxu0 0.0
  %290 = vmatpush1.msra.mxu0 0.0
  %291 = vmatprep.subr.mxu0 0.0
  %292 = vmatpush1.msra.mxu0 0.0
  %293 = vmatprep.subr.mxu0 0.0
  %294 = vmatpush1.msra.mxu0 0.0
  %295 = vmatprep.subr.mxu0 0.0
  %296 = vmatpush1.msra.mxu0 0.0
  %297 = vmatprep.subr.mxu0 0.0
  %298 = vmatpush1.msra.mxu0 0.0
  %299 = vmatprep.subr.mxu0 0.0
  %300 = vmatpush1.msra.mxu0 0.0
  %301 = vmatprep.subr.mxu0 0.0
  %302 = vmatpush1.msra.mxu0 0.0
  %303 = vmatprep.mubr.f32.mxu0 0.0
  %304 = vmatmul.mubr.f32.gmra.mrb[0].mxu0 %v216
  %v305 = vpop.f32.mrb[0].mxu0
  %v306 = vadd.f32 %v212, %v305
  %v307 = vpop.f32.mrb[0].mxu0
  %308 = vmatprep.mubr.f32.mxu0 0.0
  %309 = vmatmul.mubr.f32.gmra.mrb[0].mxu0 %v219
  %v310 = vpop.f32.mrb[0].mxu0
  %v311 = vadd.f32 %v212, %v310
  %v312 = vpop.f32.mrb[0].mxu0
  %313 = vmatprep.mubr.f32.mxu0 0.0
  %314 = vmatmul.mubr.f32.gmra.mrb[0].mxu0 %v222
  %v315 = vpop.f32.mrb[0].mxu0
  %v316 = vadd.f32 %v212, %v315
  %v317 = vpop.f32.mrb[0].mxu0
  %318 = vmatprep.mubr.f32.mxu0 0.0
  %319 = vmatmul.mubr.f32.gmra.mrb[0].mxu0 %v225
  %v320 = vpop.f32.mrb[0].mxu0
  %v321 = vadd.f32 %v212, %v320
  %v322 = vpop.f32.mrb[0].mxu0
  %323 = vmatprep.mubr.f32.mxu0 0.0
  %324 = vmatmul.mubr.f32.gmra.mrb[0].mxu0 %v228
  %v325 = vpop.f32.mrb[0].mxu0
  %v326 = vadd.f32 %v212, %v325
  %v327 = vpop.f32.mrb[0].mxu0
  %328 = vmatprep.mubr.f32.mxu0 0.0
  %329 = vmatmul.mubr.f32.gmra.mrb[0].mxu0 %v231
  %v330 = vpop.f32.mrb[0].mxu0
  %v331 = vadd.f32 %v212, %v330
  %v332 = vpop.f32.mrb[0].mxu0
  %333 = vmatprep.mubr.f32.mxu0 0.0
  %334 = vmatmul.mubr.f32.gmra.mrb[0].mxu0 %v234
  %v335 = vpop.f32.mrb[0].mxu0
  %v336 = vadd.f32 %v212, %v335
  %v337 = vpop.f32.mrb[0].mxu0
  %338 = vmatprep.mubr.f32.mxu0 0.0
  %339 = vmatmul.mubr.f32.gmra.mrb[0].mxu0 %v237
  %v340 = vpop.f32.mrb[0].mxu0
  %v341 = vadd.f32 %v212, %v340
  %v342 = vpop.f32.mrb[0].mxu0
  %343 = vdwg.mxu0
  %v344 = vld [vmem:[%s3] sm:$0xff]
  %v345 = vld [vmem:[%s3 + $0x8] sm:$0xff]
  %v346 = vld [vmem:[%s3 + $0x10] sm:$0xff]
  %v347 = vld [vmem:[%s3 + $0x18] sm:$0xff]
  %v348 = vtanh.pop %v306
  %vm349 = vcmask 261120
  %350 = vst.msk [vmem:[#allocation2] sm:$0xff] %vm349, %v348
  %v352 = vsel %vm349, %v348, 0
  %354 = vmatprep.subr.mxu0 0.0
  %355 = vmatpush1.msra.mxu0 %v344
  %356 = vmatprep.subr.mxu0 0.0
  %357 = vmatpush1.msra.mxu0 %v345
  %358 = vmatprep.subr.mxu0 0.0
  %359 = vmatpush1.msra.mxu0 %v346
  %360 = vmatprep.subr.mxu0 0.0
  %361 = vmatpush1.msra.mxu0 %v347
  %362 = vmatprep.subr.mxu0 0.0
  %363 = vmatpush1.msra.mxu0 0.0
  %364 = vmatprep.subr.mxu0 0.0
  %365 = vmatpush1.msra.mxu0 0.0
  %366 = vmatprep.subr.mxu0 0.0
  %367 = vmatpush1.msra.mxu0 0.0
  %368 = vmatprep.subr.mxu0 0.0
  %369 = vmatpush1.msra.mxu0 0.0
  %370 = vmatprep.subr.mxu0 0.0
  %371 = vmatpush1.msra.mxu0 0.0
  %372 = vmatprep.subr.mxu0 0.0
  %373 = vmatpush1.msra.mxu0 0.0
  %374 = vmatprep.subr.mxu0 0.0
  %375 = vmatpush1.msra.mxu0 0.0
  %376 = vmatprep.subr.mxu0 0.0
  %377 = vmatpush1.msra.mxu0 0.0
  %378 = vmatprep.subr.mxu0 0.0
  %379 = vmatpush1.msra.mxu0 0.0
  %380 = vmatprep.subr.mxu0 0.0
  %381 = vmatpush1.msra.mxu0 0.0
  %382 = vmatprep.subr.mxu0 0.0
  %383 = vmatpush1.msra.mxu0 0.0
  %384 = vmatprep.subr.mxu0 0.0
  %385 = vmatpush1.msra.mxu0 0.0
  %386 = vmatprep.subr.mxu0 0.0
  %387 = vmatpush1.msra.mxu0 0.0
  %388 = vmatprep.subr.mxu0 0.0
  %389 = vmatpush1.msra.mxu0 0.0
  %390 = vmatprep.subr.mxu0 0.0
  %391 = vmatpush1.msra.mxu0 0.0
  %392 = vmatprep.subr.mxu0 0.0
  %393 = vmatpush1.msra.mxu0 0.0
  %394 = vmatprep.subr.mxu0 0.0
  %395 = vmatpush1.msra.mxu0 0.0
  %396 = vmatprep.subr.mxu0 0.0
  %397 = vmatpush1.msra.mxu0 0.0
  %398 = vmatprep.subr.mxu0 0.0
  %399 = vmatpush1.msra.mxu0 0.0
  %400 = vmatprep.subr.mxu0 0.0
  %401 = vmatpush1.msra.mxu0 0.0
  %402 = vmatprep.subr.mxu0 0.0
  %403 = vmatpush1.msra.mxu0 0.0
  %404 = vmatprep.subr.mxu0 0.0
  %405 = vmatpush1.msra.mxu0 0.0
  %406 = vmatprep.subr.mxu0 0.0
  %407 = vmatpush1.msra.mxu0 0.0
  %408 = vmatprep.subr.mxu0 0.0
  %409 = vmatpush1.msra.mxu0 0.0
  %410 = vmatprep.subr.mxu0 0.0
  %411 = vmatpush1.msra.mxu0 0.0
  %412 = vmatprep.subr.mxu0 0.0
  %413 = vmatpush1.msra.mxu0 0.0
  %414 = vmatprep.subr.mxu0 0.0
  %415 = vmatpush1.msra.mxu0 0.0
  %416 = vmatprep.subr.mxu0 0.0
  %417 = vmatpush1.msra.mxu0 0.0
  %418 = vmatprep.mubr.f32.mxu0 0.0
  %419 = vmatmul.mubr.f32.gmra.mrb[0].mxu0 %v352
  %v420 = vpop.f32.mrb[0].mxu0
  %v421 = vadd.f32 0.0, %v420
  %v422 = vpop.f32.mrb[0].mxu0
  %423 = vdwg.mxu0
  %v424 = vadd.f32 %v311, %v421
  %v425 = vtanh.pop %v424
  %426 = vst.msk [vmem:[#allocation2 + $0x8] sm:$0xff] %vm349, %v425
  %v428 = vsel %vm349, %v425, 0
  %430 = vmatprep.subr.mxu0 0.0
  %431 = vmatpush1.msra.mxu0 %v344
  %432 = vmatprep.subr.mxu0 0.0
  %433 = vmatpush1.msra.mxu0 %v345
  %434 = vmatprep.subr.mxu0 0.0
  %435 = vmatpush1.msra.mxu0 %v346
  %436 = vmatprep.subr.mxu0 0.0
  %437 = vmatpush1.msra.mxu0 %v347
  %438 = vmatprep.subr.mxu0 0.0
  %439 = vmatpush1.msra.mxu0 0.0
  %440 = vmatprep.subr.mxu0 0.0
  %441 = vmatpush1.msra.mxu0 0.0
  %442 = vmatprep.subr.mxu0 0.0
  %443 = vmatpush1.msra.mxu0 0.0
  %444 = vmatprep.subr.mxu0 0.0
  %445 = vmatpush1.msra.mxu0 0.0
  %446 = vmatprep.subr.mxu0 0.0
  %447 = vmatpush1.msra.mxu0 0.0
  %448 = vmatprep.subr.mxu0 0.0
  %449 = vmatpush1.msra.mxu0 0.0
  %450 = vmatprep.subr.mxu0 0.0
  %451 = vmatpush1.msra.mxu0 0.0
  %452 = vmatprep.subr.mxu0 0.0
  %453 = vmatpush1.msra.mxu0 0.0
  %454 = vmatprep.subr.mxu0 0.0
  %455 = vmatpush1.msra.mxu0 0.0
  %456 = vmatprep.subr.mxu0 0.0
  %457 = vmatpush1.msra.mxu0 0.0
  %458 = vmatprep.subr.mxu0 0.0
  %459 = vmatpush1.msra.mxu0 0.0
  %460 = vmatprep.subr.mxu0 0.0
  %461 = vmatpush1.msra.mxu0 0.0
  %462 = vmatprep.subr.mxu0 0.0
  %463 = vmatpush1.msra.mxu0 0.0
  %464 = vmatprep.subr.mxu0 0.0
  %465 = vmatpush1.msra.mxu0 0.0
  %466 = vmatprep.subr.mxu0 0.0
  %467 = vmatpush1.msra.mxu0 0.0
  %468 = vmatprep.subr.mxu0 0.0
  %469 = vmatpush1.msra.mxu0 0.0
  %470 = vmatprep.subr.mxu0 0.0
  %471 = vmatpush1.msra.mxu0 0.0
  %472 = vmatprep.subr.mxu0 0.0
  %473 = vmatpush1.msra.mxu0 0.0
  %474 = vmatprep.subr.mxu0 0.0
  %475 = vmatpush1.msra.mxu0 0.0
  %476 = vmatprep.subr.mxu0 0.0
  %477 = vmatpush1.msra.mxu0 0.0
  %478 = vmatprep.subr.mxu0 0.0
  %479 = vmatpush1.msra.mxu0 0.0
  %480 = vmatprep.subr.mxu0 0.0
  %481 = vmatpush1.msra.mxu0 0.0
  %482 = vmatprep.subr.mxu0 0.0
  %483 = vmatpush1.msra.mxu0 0.0
  %484 = vmatprep.subr.mxu0 0.0
  %485 = vmatpush1.msra.mxu0 0.0
  %486 = vmatprep.subr.mxu0 0.0
  %487 = vmatpush1.msra.mxu0 0.0
  %488 = vmatprep.subr.mxu0 0.0
  %489 = vmatpush1.msra.mxu0 0.0
  %490 = vmatprep.subr.mxu0 0.0
  %491 = vmatpush1.msra.mxu0 0.0
  %492 = vmatprep.subr.mxu0 0.0
  %493 = vmatpush1.msra.mxu0 0.0
  %494 = vmatprep.mubr.f32.mxu0 0.0
  %495 = vmatmul.mubr.f32.gmra.mrb[0].mxu0 %v428
  %v496 = vpop.f32.mrb[0].mxu0
  %v497 = vadd.f32 0.0, %v496
  %v498 = vpop.f32.mrb[0].mxu0
  %499 = vdwg.mxu0
  %v500 = vadd.f32 %v316, %v497
  %v501 = vtanh.pop %v500
  %502 = vst.msk [vmem:[#allocation2 + $0x10] sm:$0xff] %vm349, %v501
  %v504 = vsel %vm349, %v501, 0
  %506 = vmatprep.subr.mxu0 0.0
  %507 = vmatpush1.msra.mxu0 %v344
  %508 = vmatprep.subr.mxu0 0.0
  %509 = vmatpush1.msra.mxu0 %v345
  %510 = vmatprep.subr.mxu0 0.0
  %511 = vmatpush1.msra.mxu0 %v346
  %512 = vmatprep.subr.mxu0 0.0
  %513 = vmatpush1.msra.mxu0 %v347
  %514 = vmatprep.subr.mxu0 0.0
  %515 = vmatpush1.msra.mxu0 0.0
  %516 = vmatprep.subr.mxu0 0.0
  %517 = vmatpush1.msra.mxu0 0.0
  %518 = vmatprep.subr.mxu0 0.0
  %519 = vmatpush1.msra.mxu0 0.0
  %520 = vmatprep.subr.mxu0 0.0
  %521 = vmatpush1.msra.mxu0 0.0
  %522 = vmatprep.subr.mxu0 0.0
  %523 = vmatpush1.msra.mxu0 0.0
  %524 = vmatprep.subr.mxu0 0.0
  %525 = vmatpush1.msra.mxu0 0.0
  %526 = vmatprep.subr.mxu0 0.0
  %527 = vmatpush1.msra.mxu0 0.0
  %528 = vmatprep.subr.mxu0 0.0
  %529 = vmatpush1.msra.mxu0 0.0
  %530 = vmatprep.subr.mxu0 0.0
  %531 = vmatpush1.msra.mxu0 0.0
  %532 = vmatprep.subr.mxu0 0.0
  %533 = vmatpush1.msra.mxu0 0.0
  %534 = vmatprep.subr.mxu0 0.0
  %535 = vmatpush1.msra.mxu0 0.0
  %536 = vmatprep.subr.mxu0 0.0
  %537 = vmatpush1.msra.mxu0 0.0
  %538 = vmatprep.subr.mxu0 0.0
  %539 = vmatpush1.msra.mxu0 0.0
  %540 = vmatprep.subr.mxu0 0.0
  %541 = vmatpush1.msra.mxu0 0.0
  %542 = vmatprep.subr.mxu0 0.0
  %543 = vmatpush1.msra.mxu0 0.0
  %544 = vmatprep.subr.mxu0 0.0
  %545 = vmatpush1.msra.mxu0 0.0
  %546 = vmatprep.subr.mxu0 0.0
  %547 = vmatpush1.msra.mxu0 0.0
  %548 = vmatprep.subr.mxu0 0.0
  %549 = vmatpush1.msra.mxu0 0.0
  %550 = vmatprep.subr.mxu0 0.0
  %551 = vmatpush1.msra.mxu0 0.0
  %552 = vmatprep.subr.mxu0 0.0
  %553 = vmatpush1.msra.mxu0 0.0
  %554 = vmatprep.subr.mxu0 0.0
  %555 = vmatpush1.msra.mxu0 0.0
  %556 = vmatprep.subr.mxu0 0.0
  %557 = vmatpush1.msra.mxu0 0.0
  %558 = vmatprep.subr.mxu0 0.0
  %559 = vmatpush1.msra.mxu0 0.0
  %560 = vmatprep.subr.mxu0 0.0
  %561 = vmatpush1.msra.mxu0 0.0
  %562 = vmatprep.subr.mxu0 0.0
  %563 = vmatpush1.msra.mxu0 0.0
  %564 = vmatprep.subr.mxu0 0.0
  %565 = vmatpush1.msra.mxu0 0.0
  %566 = vmatprep.subr.mxu0 0.0
  %567 = vmatpush1.msra.mxu0 0.0
  %568 = vmatprep.subr.mxu0 0.0
  %569 = vmatpush1.msra.mxu0 0.0
  %570 = vmatprep.mubr.f32.mxu0 0.0
  %571 = vmatmul.mubr.f32.gmra.mrb[0].mxu0 %v504
  %v572 = vpop.f32.mrb[0].mxu0
  %v573 = vadd.f32 0.0, %v572
  %v574 = vpop.f32.mrb[0].mxu0
  %575 = vdwg.mxu0
  %v576 = vadd.f32 %v321, %v573
  %v577 = vtanh.pop %v576
  %578 = vst.msk [vmem:[#allocation2 + $0x18] sm:$0xff] %vm349, %v577
  %v580 = vsel %vm349, %v577, 0
  %582 = vmatprep.subr.mxu0 0.0
  %583 = vmatpush1.msra.mxu0 %v344
  %584 = vmatprep.subr.mxu0 0.0
  %585 = vmatpush1.msra.mxu0 %v345
  %586 = vmatprep.subr.mxu0 0.0
  %587 = vmatpush1.msra.mxu0 %v346
  %588 = vmatprep.subr.mxu0 0.0
  %589 = vmatpush1.msra.mxu0 %v347
  %590 = vmatprep.subr.mxu0 0.0
  %591 = vmatpush1.msra.mxu0 0.0
  %592 = vmatprep.subr.mxu0 0.0
  %593 = vmatpush1.msra.mxu0 0.0
  %594 = vmatprep.subr.mxu0 0.0
  %595 = vmatpush1.msra.mxu0 0.0
  %596 = vmatprep.subr.mxu0 0.0
  %597 = vmatpush1.msra.mxu0 0.0
  %598 = vmatprep.subr.mxu0 0.0
  %599 = vmatpush1.msra.mxu0 0.0
  %600 = vmatprep.subr.mxu0 0.0
  %601 = vmatpush1.msra.mxu0 0.0
  %602 = vmatprep.subr.mxu0 0.0
  %603 = vmatpush1.msra.mxu0 0.0
  %604 = vmatprep.subr.mxu0 0.0
  %605 = vmatpush1.msra.mxu0 0.0
  %606 = vmatprep.subr.mxu0 0.0
  %607 = vmatpush1.msra.mxu0 0.0
  %608 = vmatprep.subr.mxu0 0.0
  %609 = vmatpush1.msra.mxu0 0.0
  %610 = vmatprep.subr.mxu0 0.0
  %611 = vmatpush1.msra.mxu0 0.0
  %612 = vmatprep.subr.mxu0 0.0
  %613 = vmatpush1.msra.mxu0 0.0
  %614 = vmatprep.subr.mxu0 0.0
  %615 = vmatpush1.msra.mxu0 0.0
  %616 = vmatprep.subr.mxu0 0.0
  %617 = vmatpush1.msra.mxu0 0.0
  %618 = vmatprep.subr.mxu0 0.0
  %619 = vmatpush1.msra.mxu0 0.0
  %620 = vmatprep.subr.mxu0 0.0
  %621 = vmatpush1.msra.mxu0 0.0
  %622 = vmatprep.subr.mxu0 0.0
  %623 = vmatpush1.msra.mxu0 0.0
  %624 = vmatprep.subr.mxu0 0.0
  %625 = vmatpush1.msra.mxu0 0.0
  %626 = vmatprep.subr.mxu0 0.0
  %627 = vmatpush1.msra.mxu0 0.0
  %628 = vmatprep.subr.mxu0 0.0
  %629 = vmatpush1.msra.mxu0 0.0
  %630 = vmatprep.subr.mxu0 0.0
  %631 = vmatpush1.msra.mxu0 0.0
  %632 = vmatprep.subr.mxu0 0.0
  %633 = vmatpush1.msra.mxu0 0.0
  %634 = vmatprep.subr.mxu0 0.0
  %635 = vmatpush1.msra.mxu0 0.0
  %636 = vmatprep.subr.mxu0 0.0
  %637 = vmatpush1.msra.mxu0 0.0
  %638 = vmatprep.subr.mxu0 0.0
  %639 = vmatpush1.msra.mxu0 0.0
  %640 = vmatprep.subr.mxu0 0.0
  %641 = vmatpush1.msra.mxu0 0.0
  %642 = vmatprep.subr.mxu0 0.0
  %643 = vmatpush1.msra.mxu0 0.0
  %644 = vmatprep.subr.mxu0 0.0
  %645 = vmatpush1.msra.mxu0 0.0
  %646 = vmatprep.mubr.f32.mxu0 0.0
  %647 = vmatmul.mubr.f32.gmra.mrb[0].mxu0 %v580
  %v648 = vpop.f32.mrb[0].mxu0
  %v649 = vadd.f32 0.0, %v648
  %v650 = vpop.f32.mrb[0].mxu0
  %651 = vdwg.mxu0
  %v652 = vadd.f32 %v326, %v649
  %v653 = vtanh.pop %v652
  %654 = vst.msk [vmem:[#allocation2 + $0x20] sm:$0xff] %vm349, %v653
  %v656 = vsel %vm349, %v653, 0
  %658 = vmatprep.subr.mxu0 0.0
  %659 = vmatpush1.msra.mxu0 %v344
  %660 = vmatprep.subr.mxu0 0.0
  %661 = vmatpush1.msra.mxu0 %v345
  %662 = vmatprep.subr.mxu0 0.0
  %663 = vmatpush1.msra.mxu0 %v346
  %664 = vmatprep.subr.mxu0 0.0
  %665 = vmatpush1.msra.mxu0 %v347
  %666 = vmatprep.subr.mxu0 0.0
  %667 = vmatpush1.msra.mxu0 0.0
  %668 = vmatprep.subr.mxu0 0.0
  %669 = vmatpush1.msra.mxu0 0.0
  %670 = vmatprep.subr.mxu0 0.0
  %671 = vmatpush1.msra.mxu0 0.0
  %672 = vmatprep.subr.mxu0 0.0
  %673 = vmatpush1.msra.mxu0 0.0
  %674 = vmatprep.subr.mxu0 0.0
  %675 = vmatpush1.msra.mxu0 0.0
  %676 = vmatprep.subr.mxu0 0.0
  %677 = vmatpush1.msra.mxu0 0.0
  %678 = vmatprep.subr.mxu0 0.0
  %679 = vmatpush1.msra.mxu0 0.0
  %680 = vmatprep.subr.mxu0 0.0
  %681 = vmatpush1.msra.mxu0 0.0
  %682 = vmatprep.subr.mxu0 0.0
  %683 = vmatpush1.msra.mxu0 0.0
  %684 = vmatprep.subr.mxu0 0.0
  %685 = vmatpush1.msra.mxu0 0.0
  %686 = vmatprep.subr.mxu0 0.0
  %687 = vmatpush1.msra.mxu0 0.0
  %688 = vmatprep.subr.mxu0 0.0
  %689 = vmatpush1.msra.mxu0 0.0
  %690 = vmatprep.subr.mxu0 0.0
  %691 = vmatpush1.msra.mxu0 0.0
  %692 = vmatprep.subr.mxu0 0.0
  %693 = vmatpush1.msra.mxu0 0.0
  %694 = vmatprep.subr.mxu0 0.0
  %695 = vmatpush1.msra.mxu0 0.0
  %696 = vmatprep.subr.mxu0 0.0
  %697 = vmatpush1.msra.mxu0 0.0
  %698 = vmatprep.subr.mxu0 0.0
  %699 = vmatpush1.msra.mxu0 0.0
  %700 = vmatprep.subr.mxu0 0.0
  %701 = vmatpush1.msra.mxu0 0.0
  %702 = vmatprep.subr.mxu0 0.0
  %703 = vmatpush1.msra.mxu0 0.0
  %704 = vmatprep.subr.mxu0 0.0
  %705 = vmatpush1.msra.mxu0 0.0
  %706 = vmatprep.subr.mxu0 0.0
  %707 = vmatpush1.msra.mxu0 0.0
  %708 = vmatprep.subr.mxu0 0.0
  %709 = vmatpush1.msra.mxu0 0.0
  %710 = vmatprep.subr.mxu0 0.0
  %711 = vmatpush1.msra.mxu0 0.0
  %712 = vmatprep.subr.mxu0 0.0
  %713 = vmatpush1.msra.mxu0 0.0
  %714 = vmatprep.subr.mxu0 0.0
  %715 = vmatpush1.msra.mxu0 0.0
  %716 = vmatprep.subr.mxu0 0.0
  %717 = vmatpush1.msra.mxu0 0.0
  %718 = vmatprep.subr.mxu0 0.0
  %719 = vmatpush1.msra.mxu0 0.0
  %720 = vmatprep.subr.mxu0 0.0
  %721 = vmatpush1.msra.mxu0 0.0
  %722 = vmatprep.mubr.f32.mxu0 0.0
  %723 = vmatmul.mubr.f32.gmra.mrb[0].mxu0 %v656
  %v724 = vpop.f32.mrb[0].mxu0
  %v725 = vadd.f32 0.0, %v724
  %v726 = vpop.f32.mrb[0].mxu0
  %727 = vdwg.mxu0
  %v728 = vadd.f32 %v331, %v725
  %v729 = vtanh.pop %v728
  %730 = vst.msk [vmem:[#allocation2 + $0x28] sm:$0xff] %vm349, %v729
  %v732 = vsel %vm349, %v729, 0
  %734 = vmatprep.subr.mxu0 0.0
  %735 = vmatpush1.msra.mxu0 %v344
  %736 = vmatprep.subr.mxu0 0.0
  %737 = vmatpush1.msra.mxu0 %v345
  %738 = vmatprep.subr.mxu0 0.0
  %739 = vmatpush1.msra.mxu0 %v346
  %740 = vmatprep.subr.mxu0 0.0
  %741 = vmatpush1.msra.mxu0 %v347
  %742 = vmatprep.subr.mxu0 0.0
  %743 = vmatpush1.msra.mxu0 0.0
  %744 = vmatprep.subr.mxu0 0.0
  %745 = vmatpush1.msra.mxu0 0.0
  %746 = vmatprep.subr.mxu0 0.0
  %747 = vmatpush1.msra.mxu0 0.0
  %748 = vmatprep.subr.mxu0 0.0
  %749 = vmatpush1.msra.mxu0 0.0
  %750 = vmatprep.subr.mxu0 0.0
  %751 = vmatpush1.msra.mxu0 0.0
  %752 = vmatprep.subr.mxu0 0.0
  %753 = vmatpush1.msra.mxu0 0.0
  %754 = vmatprep.subr.mxu0 0.0
  %755 = vmatpush1.msra.mxu0 0.0
  %756 = vmatprep.subr.mxu0 0.0
  %757 = vmatpush1.msra.mxu0 0.0
  %758 = vmatprep.subr.mxu0 0.0
  %759 = vmatpush1.msra.mxu0 0.0
  %760 = vmatprep.subr.mxu0 0.0
  %761 = vmatpush1.msra.mxu0 0.0
  %762 = vmatprep.subr.mxu0 0.0
  %763 = vmatpush1.msra.mxu0 0.0
  %764 = vmatprep.subr.mxu0 0.0
  %765 = vmatpush1.msra.mxu0 0.0
  %766 = vmatprep.subr.mxu0 0.0
  %767 = vmatpush1.msra.mxu0 0.0
  %768 = vmatprep.subr.mxu0 0.0
  %769 = vmatpush1.msra.mxu0 0.0
  %770 = vmatprep.subr.mxu0 0.0
  %771 = vmatpush1.msra.mxu0 0.0
  %772 = vmatprep.subr.mxu0 0.0
  %773 = vmatpush1.msra.mxu0 0.0
  %774 = vmatprep.subr.mxu0 0.0
  %775 = vmatpush1.msra.mxu0 0.0
  %776 = vmatprep.subr.mxu0 0.0
  %777 = vmatpush1.msra.mxu0 0.0
  %778 = vmatprep.subr.mxu0 0.0
  %779 = vmatpush1.msra.mxu0 0.0
  %780 = vmatprep.subr.mxu0 0.0
  %781 = vmatpush1.msra.mxu0 0.0
  %782 = vmatprep.subr.mxu0 0.0
  %783 = vmatpush1.msra.mxu0 0.0
  %784 = vmatprep.subr.mxu0 0.0
  %785 = vmatpush1.msra.mxu0 0.0
  %786 = vmatprep.subr.mxu0 0.0
  %787 = vmatpush1.msra.mxu0 0.0
  %788 = vmatprep.subr.mxu0 0.0
  %789 = vmatpush1.msra.mxu0 0.0
  %790 = vmatprep.subr.mxu0 0.0
  %791 = vmatpush1.msra.mxu0 0.0
  %792 = vmatprep.subr.mxu0 0.0
  %793 = vmatpush1.msra.mxu0 0.0
  %794 = vmatprep.subr.mxu0 0.0
  %795 = vmatpush1.msra.mxu0 0.0
  %796 = vmatprep.subr.mxu0 0.0
  %797 = vmatpush1.msra.mxu0 0.0
  %798 = vmatprep.mubr.f32.mxu0 0.0
  %799 = vmatmul.mubr.f32.gmra.mrb[0].mxu0 %v732
  %v800 = vpop.f32.mrb[0].mxu0
  %v801 = vadd.f32 0.0, %v800
  %v802 = vpop.f32.mrb[0].mxu0
  %803 = vdwg.mxu0
  %v804 = vadd.f32 %v336, %v801
  %v805 = vtanh.pop %v804
  %806 = vst.msk [vmem:[#allocation2 + $0x30] sm:$0xff] %vm349, %v805
  %v808 = vsel %vm349, %v805, 0
  %810 = vmatprep.subr.mxu0 0.0
  %811 = vmatpush1.msra.mxu0 %v344
  %812 = vmatprep.subr.mxu0 0.0
  %813 = vmatpush1.msra.mxu0 %v345
  %814 = vmatprep.subr.mxu0 0.0
  %815 = vmatpush1.msra.mxu0 %v346
  %816 = vmatprep.subr.mxu0 0.0
  %817 = vmatpush1.msra.mxu0 %v347
  %818 = vmatprep.subr.mxu0 0.0
  %819 = vmatpush1.msra.mxu0 0.0
  %820 = vmatprep.subr.mxu0 0.0
  %821 = vmatpush1.msra.mxu0 0.0
  %822 = vmatprep.subr.mxu0 0.0
  %823 = vmatpush1.msra.mxu0 0.0
  %824 = vmatprep.subr.mxu0 0.0
  %825 = vmatpush1.msra.mxu0 0.0
  %826 = vmatprep.subr.mxu0 0.0
  %827 = vmatpush1.msra.mxu0 0.0
  %828 = vmatprep.subr.mxu0 0.0
  %829 = vmatpush1.msra.mxu0 0.0
  %830 = vmatprep.subr.mxu0 0.0
  %831 = vmatpush1.msra.mxu0 0.0
  %832 = vmatprep.subr.mxu0 0.0
  %833 = vmatpush1.msra.mxu0 0.0
  %834 = vmatprep.subr.mxu0 0.0
  %835 = vmatpush1.msra.mxu0 0.0
  %836 = vmatprep.subr.mxu0 0.0
  %837 = vmatpush1.msra.mxu0 0.0
  %838 = vmatprep.subr.mxu0 0.0
  %839 = vmatpush1.msra.mxu0 0.0
  %840 = vmatprep.subr.mxu0 0.0
  %841 = vmatpush1.msra.mxu0 0.0
  %842 = vmatprep.subr.mxu0 0.0
  %843 = vmatpush1.msra.mxu0 0.0
  %844 = vmatprep.subr.mxu0 0.0
  %845 = vmatpush1.msra.mxu0 0.0
  %846 = vmatprep.subr.mxu0 0.0
  %847 = vmatpush1.msra.mxu0 0.0
  %848 = vmatprep.subr.mxu0 0.0
  %849 = vmatpush1.msra.mxu0 0.0
  %850 = vmatprep.subr.mxu0 0.0
  %851 = vmatpush1.msra.mxu0 0.0
  %852 = vmatprep.subr.mxu0 0.0
  %853 = vmatpush1.msra.mxu0 0.0
  %854 = vmatprep.subr.mxu0 0.0
  %855 = vmatpush1.msra.mxu0 0.0
  %856 = vmatprep.subr.mxu0 0.0
  %857 = vmatpush1.msra.mxu0 0.0
  %858 = vmatprep.subr.mxu0 0.0
  %859 = vmatpush1.msra.mxu0 0.0
  %860 = vmatprep.subr.mxu0 0.0
  %861 = vmatpush1.msra.mxu0 0.0
  %862 = vmatprep.subr.mxu0 0.0
  %863 = vmatpush1.msra.mxu0 0.0
  %864 = vmatprep.subr.mxu0 0.0
  %865 = vmatpush1.msra.mxu0 0.0
  %866 = vmatprep.subr.mxu0 0.0
  %867 = vmatpush1.msra.mxu0 0.0
  %868 = vmatprep.subr.mxu0 0.0
  %869 = vmatpush1.msra.mxu0 0.0
  %870 = vmatprep.subr.mxu0 0.0
  %871 = vmatpush1.msra.mxu0 0.0
  %872 = vmatprep.subr.mxu0 0.0
  %873 = vmatpush1.msra.mxu0 0.0
  %874 = vmatprep.mubr.f32.mxu0 0.0
  %875 = vmatmul.mubr.f32.gmra.mrb[0].mxu0 %v808
  %v876 = vpop.f32.mrb[0].mxu0
  %v877 = vadd.f32 0.0, %v876
  %v878 = vpop.f32.mrb[0].mxu0
  %879 = vdwg.mxu0
  %v880 = vadd.f32 %v341, %v877
  %v881 = vtanh.pop %v880
  %882 = vst.msk [vmem:[#allocation2 + $0x38] sm:$0xff] %vm349, %v881
  %v883 = vld [vmem:[#allocation2] sm:$0xff]
  %v884 = vld [vmem:[#allocation2 + $0x8] sm:$0xff]
  %v885 = vld [vmem:[#allocation2 + $0x10] sm:$0xff]
  %v886 = vld [vmem:[#allocation2 + $0x18] sm:$0xff]
  %v887 = vld [vmem:[#allocation2 + $0x20] sm:$0xff]
  %v888 = vld [vmem:[#allocation2 + $0x28] sm:$0xff]
  %v889 = vld [vmem:[#allocation2 + $0x30] sm:$0xff]
  %v890 = vld [vmem:[#allocation2 + $0x38] sm:$0xff]
  %v891 = vld [vmem:[%s5] sm:$0xff]
  %v892 = vld [vmem:[%s5 + $0x8] sm:$0xff]
  %v893 = vld [vmem:[%s5 + $0x10] sm:$0xff]
  %v894 = vld [vmem:[%s5 + $0x18] sm:$0xff]
  %v895 = vld [vmem:[%s6] sm:$0x1]
  %v897 = vlaneseq
  %v898 = vshrl.u32 %v897, 7
  %v899 = vsub.s32 0, %v898
  %v900 = vrot.slane %v895, %v899
  %v903 = vsel %vm349, %v883, 0
  %v906 = vsel %vm349, %v884, 0
  %v909 = vsel %vm349, %v885, 0
  %v912 = vsel %vm349, %v886, 0
  %v915 = vsel %vm349, %v887, 0
  %v918 = vsel %vm349, %v888, 0
  %v921 = vsel %vm349, %v889, 0
  %v924 = vsel %vm349, %v890, 0
  %926 = vmatprep.subr.mxu0 0.0
  %927 = vmatpush1.msra.mxu0 %v891
  %928 = vmatprep.subr.mxu0 0.0
  %929 = vmatpush1.msra.mxu0 %v892
  %930 = vmatprep.subr.mxu0 0.0
  %931 = vmatpush1.msra.mxu0 %v893
  %932 = vmatprep.subr.mxu0 0.0
  %933 = vmatpush1.msra.mxu0 %v894
  %934 = vmatprep.subr.mxu0 0.0
  %935 = vmatpush1.msra.mxu0 0.0
  %936 = vmatprep.subr.mxu0 0.0
  %937 = vmatpush1.msra.mxu0 0.0
  %938 = vmatprep.subr.mxu0 0.0
  %939 = vmatpush1.msra.mxu0 0.0
  %940 = vmatprep.subr.mxu0 0.0
  %941 = vmatpush1.msra.mxu0 0.0
  %942 = vmatprep.subr.mxu0 0.0
  %943 = vmatpush1.msra.mxu0 0.0
  %944 = vmatprep.subr.mxu0 0.0
  %945 = vmatpush1.msra.mxu0 0.0
  %946 = vmatprep.subr.mxu0 0.0
  %947 = vmatpush1.msra.mxu0 0.0
  %948 = vmatprep.subr.mxu0 0.0
  %949 = vmatpush1.msra.mxu0 0.0
  %950 = vmatprep.subr.mxu0 0.0
  %951 = vmatpush1.msra.mxu0 0.0
  %952 = vmatprep.subr.mxu0 0.0
  %953 = vmatpush1.msra.mxu0 0.0
  %954 = vmatprep.subr.mxu0 0.0
  %955 = vmatpush1.msra.mxu0 0.0
  %956 = vmatprep.subr.mxu0 0.0
  %957 = vmatpush1.msra.mxu0 0.0
  %958 = vmatprep.subr.mxu0 0.0
  %959 = vmatpush1.msra.mxu0 0.0
  %960 = vmatprep.subr.mxu0 0.0
  %961 = vmatpush1.msra.mxu0 0.0
  %962 = vmatprep.subr.mxu0 0.0
  %963 = vmatpush1.msra.mxu0 0.0
  %964 = vmatprep.subr.mxu0 0.0
  %965 = vmatpush1.msra.mxu0 0.0
  %966 = vmatprep.subr.mxu0 0.0
  %967 = vmatpush1.msra.mxu0 0.0
  %968 = vmatprep.subr.mxu0 0.0
  %969 = vmatpush1.msra.mxu0 0.0
  %970 = vmatprep.subr.mxu0 0.0
  %971 = vmatpush1.msra.mxu0 0.0
  %972 = vmatprep.subr.mxu0 0.0
  %973 = vmatpush1.msra.mxu0 0.0
  %974 = vmatprep.subr.mxu0 0.0
  %975 = vmatpush1.msra.mxu0 0.0
  %976 = vmatprep.subr.mxu0 0.0
  %977 = vmatpush1.msra.mxu0 0.0
  %978 = vmatprep.subr.mxu0 0.0
  %979 = vmatpush1.msra.mxu0 0.0
  %980 = vmatprep.subr.mxu0 0.0
  %981 = vmatpush1.msra.mxu0 0.0
  %982 = vmatprep.subr.mxu0 0.0
  %983 = vmatpush1.msra.mxu0 0.0
  %984 = vmatprep.subr.mxu0 0.0
  %985 = vmatpush1.msra.mxu0 0.0
  %986 = vmatprep.subr.mxu0 0.0
  %987 = vmatpush1.msra.mxu0 0.0
  %988 = vmatprep.subr.mxu0 0.0
  %989 = vmatpush1.msra.mxu0 0.0
  %990 = vmatprep.mubr.f32.mxu0 0.0
  %991 = vmatmul.mubr.f32.gmra.mrb[0].mxu0 %v903
  %v992 = vpop.f32.mrb[0].mxu0
  %v993 = vadd.f32 %v900, %v992
  %v994 = vpop.f32.mrb[0].mxu0
  %995 = vmatprep.mubr.f32.mxu0 0.0
  %996 = vmatmul.mubr.f32.gmra.mrb[0].mxu0 %v906
  %v997 = vpop.f32.mrb[0].mxu0
  %v998 = vadd.f32 %v900, %v997
  %v999 = vpop.f32.mrb[0].mxu0
  %1000 = vmatprep.mubr.f32.mxu0 0.0
  %1001 = vmatmul.mubr.f32.gmra.mrb[0].mxu0 %v909
  %v1002 = vpop.f32.mrb[0].mxu0
  %v1003 = vadd.f32 %v900, %v1002
  %v1004 = vpop.f32.mrb[0].mxu0
  %1005 = vmatprep.mubr.f32.mxu0 0.0
  %1006 = vmatmul.mubr.f32.gmra.mrb[0].mxu0 %v912
  %v1007 = vpop.f32.mrb[0].mxu0
  %v1008 = vadd.f32 %v900, %v1007
  %v1009 = vpop.f32.mrb[0].mxu0
  %1010 = vmatprep.mubr.f32.mxu0 0.0
  %1011 = vmatmul.mubr.f32.gmra.mrb[0].mxu0 %v915
  %v1012 = vpop.f32.mrb[0].mxu0
  %v1013 = vadd.f32 %v900, %v1012
  %v1014 = vpop.f32.mrb[0].mxu0
  %1015 = vmatprep.mubr.f32.mxu0 0.0
  %1016 = vmatmul.mubr.f32.gmra.mrb[0].mxu0 %v918
  %v1017 = vpop.f32.mrb[0].mxu0
  %v1018 = vadd.f32 %v900, %v1017
  %v1019 = vpop.f32.mrb[0].mxu0
  %1020 = vmatprep.mubr.f32.mxu0 0.0
  %1021 = vmatmul.mubr.f32.gmra.mrb[0].mxu0 %v921
  %v1022 = vpop.f32.mrb[0].mxu0
  %v1023 = vadd.f32 %v900, %v1022
  %v1024 = vpop.f32.mrb[0].mxu0
  %1025 = vmatprep.mubr.f32.mxu0 0.0
  %1026 = vmatmul.mubr.f32.gmra.mrb[0].mxu0 %v924
  %v1027 = vpop.f32.mrb[0].mxu0
  %v1028 = vadd.f32 %v900, %v1027
  %v1029 = vpop.f32.mrb[0].mxu0
  %1030 = vdwg.mxu0
  %1031 = vmax.xlane.f32.xlu0 %v993
  %v1032 = vpop.xlane.xlu0 %1031
  %1033 = vmax.xlane.f32.xlu0 %v998
  %v1034 = vpop.xlane.xlu0 %1033
  %1035 = vmax.xlane.f32.xlu0 %v1003
  %v1036 = vpop.xlane.xlu0 %1035
  %1037 = vmax.xlane.f32.xlu0 %v1008
  %v1038 = vpop.xlane.xlu0 %1037
  %1039 = vmax.xlane.f32.xlu0 %v1013
  %v1040 = vpop.xlane.xlu0 %1039
  %1041 = vmax.xlane.f32.xlu0 %v1018
  %v1042 = vpop.xlane.xlu0 %1041
  %1043 = vmax.xlane.f32.xlu0 %v1023
  %v1044 = vpop.xlane.xlu0 %1043
  %1045 = vmax.xlane.f32.xlu0 %v1028
  %v1046 = vpop.xlane.xlu0 %1045
  %v1047 = vsub.f32 %v993, %v1032
  %v1048 = vsub.f32 %v998, %v1034
  %v1049 = vsub.f32 %v1003, %v1036
  %v1050 = vsub.f32 %v1008, %v1038
  %v1051 = vsub.f32 %v1013, %v1040
  %v1052 = vsub.f32 %v1018, %v1042
  %v1053 = vsub.f32 %v1023, %v1044
  %v1054 = vsub.f32 %v1028, %v1046
  %v1055 = vmul.f32 %v1047, 1.442695
  %v1056 = vpow.pop %v1055
  %v1057 = vmul.f32 %v1048, 1.442695
  %v1058 = vpow.pop %v1057
  %v1059 = vmul.f32 %v1049, 1.442695
  %v1060 = vpow.pop %v1059
  %v1061 = vmul.f32 %v1050, 1.442695
  %v1062 = vpow.pop %v1061
  %v1063 = vmul.f32 %v1051, 1.442695
  %v1064 = vpow.pop %v1063
  %v1065 = vmul.f32 %v1052, 1.442695
  %v1066 = vpow.pop %v1065
  %v1067 = vmul.f32 %v1053, 1.442695
  %v1068 = vpow.pop %v1067
  %v1069 = vmul.f32 %v1054, 1.442695
  %v1070 = vpow.pop %v1069
  %1071 = vadd.xlane.f32.xlu0 %v1056
  %v1072 = vpop.xlane.xlu0 %1071
  %1073 = vadd.xlane.f32.xlu0 %v1058
  %v1074 = vpop.xlane.xlu0 %1073
  %1075 = vadd.xlane.f32.xlu0 %v1060
  %v1076 = vpop.xlane.xlu0 %1075
  %1077 = vadd.xlane.f32.xlu0 %v1062
  %v1078 = vpop.xlane.xlu0 %1077
  %1079 = vadd.xlane.f32.xlu0 %v1064
  %v1080 = vpop.xlane.xlu0 %1079
  %1081 = vadd.xlane.f32.xlu0 %v1066
  %v1082 = vpop.xlane.xlu0 %1081
  %1083 = vadd.xlane.f32.xlu0 %v1068
  %v1084 = vpop.xlane.xlu0 %1083
  %1085 = vadd.xlane.f32.xlu0 %v1070
  %v1086 = vpop.xlane.xlu0 %1085
  %v1087 = vlog2.pop %v1072
  %v1088 = vmul.f32 %v1087, 0.6931472
  %v1089 = vlog2.pop %v1074
  %v1090 = vmul.f32 %v1089, 0.6931472
  %v1091 = vlog2.pop %v1076
  %v1092 = vmul.f32 %v1091, 0.6931472
  %v1093 = vlog2.pop %v1078
  %v1094 = vmul.f32 %v1093, 0.6931472
  %v1095 = vlog2.pop %v1080
  %v1096 = vmul.f32 %v1095, 0.6931472
  %v1097 = vlog2.pop %v1082
  %v1098 = vmul.f32 %v1097, 0.6931472
  %v1099 = vlog2.pop %v1084
  %v1100 = vmul.f32 %v1099, 0.6931472
  %v1101 = vlog2.pop %v1086
  %v1102 = vmul.f32 %v1101, 0.6931472
  %v1103 = vadd.f32 %v1032, %v1088
  %v1104 = vadd.f32 %v1034, %v1090
  %v1105 = vadd.f32 %v1036, %v1092
  %v1106 = vadd.f32 %v1038, %v1094
  %v1107 = vadd.f32 %v1040, %v1096
  %v1108 = vadd.f32 %v1042, %v1098
  %v1109 = vadd.f32 %v1044, %v1100
  %v1110 = vadd.f32 %v1046, %v1102
  %v1111 = vsub.f32 %v993, %v1103
  %v1112 = vsub.f32 %v998, %v1104
  %v1113 = vsub.f32 %v1003, %v1105
  %v1114 = vsub.f32 %v1008, %v1106
  %v1115 = vsub.f32 %v1013, %v1107
  %v1116 = vsub.f32 %v1018, %v1108
  %v1117 = vsub.f32 %v1023, %v1109
  %v1118 = vsub.f32 %v1028, %v1110
  %1119 = vst [vmem:[%s7] sm:$0xff] %v1111
  %1120 = vst [vmem:[%s7 + $0x8] sm:$0xff] %v1112
  %1121 = vst [vmem:[%s7 + $0x10] sm:$0xff] %v1113
  %1122 = vst [vmem:[%s7 + $0x18] sm:$0xff] %v1114
  %1123 = vst [vmem:[%s7 + $0x20] sm:$0xff] %v1115
  %1124 = vst [vmem:[%s7 + $0x28] sm:$0xff] %v1116
  %1125 = vst [vmem:[%s7 + $0x30] sm:$0xff] %v1117
  %1126 = vst [vmem:[%s7 + $0x38] sm:$0xff] %v1118
  // Predicated region
  $region30: #{pipeline_model_forward.1} parent=0 // pred_check
    _
  $region31: #{pipeline_model_forward.1} parent=0 // pred_check_branch
    %1128 = sbr.rel (0) target = $region33
  $region32: #{pipeline_model_forward.1} parent=0 // pred_region
    _
  $region33: #{pipeline_model_forward.1} parent=0 // pred_fallthru
    _
  // Predicated region
  $region34: #{pipeline_model_forward.1} parent=0 // pred_check
    _
  $region35: #{pipeline_model_forward.1} parent=0 // pred_check_branch
    %1130 = sbr.rel (0) target = $region37
  $region36: #{pipeline_model_forward.1} parent=0 // pred_region
    _
  $region37: #{pipeline_model_forward.1} parent=0 // pred_fallthru
    _

</llo_original>
